<compile_context>
chip_gen: v7x
topology: tpu7x:2x2x1
jax: 0.10.0
libtpu: 0.0.40
codegen_flags: <defaults>
</compile_context>

<pallas_src>
import functools
import math

import jax
import jax.numpy as jnp
from jax.experimental import pallas as pl
from jax.experimental.pallas import tpu as pltpu


def _aggregate_add_linear_kernel(x_ref, w_ref, b_ref, o_ref, *, num_layers):
    """One tile of Aggregate(add, Linear_0, ..., Linear_{L-1}).

    x_ref: (tile_m, Din)        -- current row tile of the input
    w_ref: (L, Din, Dout)       -- all layer weights (resident across steps)
    b_ref: (L, 1, Dout)         -- all layer biases
    o_ref: (tile_m, Dout)       -- aggregated output tile
    """
    x = x_ref[...]
    w = w_ref[...]          # (L, Din, Dout)
    b = b_ref[...]          # (L, 1, Dout)

    # layer 0
    result = jnp.dot(x, w[0], preferred_element_type=jnp.float32) + b[0]

    # remaining layers, combined with the aggregate function (elementwise add)
    for l in range(1, num_layers):
        layer_out = jnp.dot(x, w[l], preferred_element_type=jnp.float32) + b[l]
        result = result + layer_out

    o_ref[...] = result.astype(o_ref.dtype)


def _pick_tile_m(m):
    """Single block for small inputs; multi-row (few-MiB) tiles for big ones."""
    if m <= 1024:
        return m
    for t in (1024, 512, 256, 128, 64, 32, 16, 8):
        if m % t == 0:
            return t
    return m  # odd row count: fall back to one full block


def aggregate_forward(x, weights, biases, *, tile_m=None):
    """Aggregate(add, Linear_0, ..., Linear_{L-1}) forward.

    x:       (..., Din)
    weights: (L, Din, Dout)
    biases:  (L, Dout)
    returns  (..., Dout) == sum_l (x @ W_l + b_l)
    """
    *lead, din = x.shape
    num_layers, din_w, dout = weights.shape
    assert din == din_w, "input feature dim must match weight Din"
    assert biases.shape == (num_layers, dout)

    m = math.prod(lead) if lead else 1
    x2d = x.reshape(m, din)                      # free reshape (contiguous)
    b3d = biases.reshape(num_layers, 1, dout)    # broadcastable against rows

    if tile_m is None:
        tile_m = _pick_tile_m(m)
    grid = (m // tile_m,)

    kernel = functools.partial(_aggregate_add_linear_kernel,
                               num_layers=num_layers)

    out2d = pl.pallas_call(
        kernel,
        out_shape=jax.ShapeDtypeStruct((m, dout), x.dtype),
        grid=grid,
        in_specs=[
            # row tile of the input; marches over the grid
            pl.BlockSpec((tile_m, din), lambda i: (i, 0)),
            # full weight / bias stacks; same block every step -> stay resident
            pl.BlockSpec((num_layers, din_w, dout), lambda i: (0, 0, 0)),
            pl.BlockSpec((num_layers, 1, dout), lambda i: (0, 0, 0)),
        ],
        out_specs=pl.BlockSpec((tile_m, dout), lambda i: (i, 0)),
        compiler_params=pltpu.CompilerParams(
            dimension_semantics=("parallel",),   # lets v7x shard rows over 2 TCs
        ),
    )(x2d, weights, b3d)

    return out2d.reshape(*lead, dout)


if __name__ == "__main__":
    key = jax.random.PRNGKey(0)
    kx, kw, kb = jax.random.split(key, 3)

    # Small shapes consistent with Aggregate over Linear layers:
    # batch=2, seq=8, hidden(din)=32, dout=32, 2 aggregated layers.
    B, S, DIN, DOUT, L = 2, 8, 32, 32, 2

    x = jax.random.normal(kx, (B, S, DIN), dtype=jnp.float32)
    weights = jax.random.normal(kw, (L, DIN, DOUT), dtype=jnp.float32) / jnp.sqrt(DIN)
    biases = jax.random.normal(kb, (L, DOUT), dtype=jnp.float32)

    y = jax.block_until_ready(aggregate_forward(x, weights, biases))

    # Pure-JAX reference mirroring the PyTorch Aggregate loop.
    ref = None
    for l in range(L):
        layer_out = x @ weights[l] + biases[l]
        ref = layer_out if ref is None else ref + layer_out

    assert y.shape == (B, S, DOUT) and y.dtype == x.dtype
    assert bool(jnp.allclose(y, ref, atol=1e-2, rtol=1e-2)), (
        "mismatch vs reference: max abs diff "
        f"{float(jnp.max(jnp.abs(y - ref)))}"
    )

    print("KERNEL_OK")
</pallas_src>

<mosaic_0001>
module attributes {stable_mosaic.version = 11 : i64} {
  func.func @_aggregate_add_linear_kernel(%arg0: i32, %arg1: memref<16x32xf32, #tpu.memory_space<vmem>>, %arg2: memref<2x32x32xf32, #tpu.memory_space<vmem>>, %arg3: memref<2x1x32xf32, #tpu.memory_space<vmem>>, %arg4: memref<16x32xf32, #tpu.memory_space<vmem>>) attributes {dimension_semantics = [#tpu.dimension_semantics<parallel>], iteration_bounds = array<i64: 1>, scalar_prefetch = 0 : i64, scratch_operands = 0 : i64, tpu.core_type = #tpu.core_type<tc>, window_params = [{transform_indices = @transform_0, window_bounds = array<i64: 16, 32>}, {pipeline_mode = #tpu.pipeline_mode<synchronous>, transform_indices = @transform_1, window_bounds = array<i64: 2, 32, 32>}, {pipeline_mode = #tpu.pipeline_mode<synchronous>, transform_indices = @transform_2, window_bounds = array<i64: 2, 1, 32>}, {transform_indices = @transform_3, window_bounds = array<i64: 16, 32>}]} {
    %c0 = arith.constant 0 : index
    %c0_0 = arith.constant 0 : index
    %0 = vector.load %arg1[%c0, %c0_0] : memref<16x32xf32, #tpu.memory_space<vmem>>, vector<16x32xf32>
    %c0_1 = arith.constant 0 : index
    %c0_2 = arith.constant 0 : index
    %c0_3 = arith.constant 0 : index
    %1 = vector.load %arg2[%c0_1, %c0_2, %c0_3] : memref<2x32x32xf32, #tpu.memory_space<vmem>>, vector<2x32x32xf32>
    %c0_4 = arith.constant 0 : index
    %c0_5 = arith.constant 0 : index
    %c0_6 = arith.constant 0 : index
    %2 = vector.load %arg3[%c0_4, %c0_5, %c0_6] : memref<2x1x32xf32, #tpu.memory_space<vmem>>, vector<2x1x32xf32>
    %3 = vector.extract_strided_slice %1 {offsets = [0, 0, 0], sizes = [1, 32, 32], strides = [1, 1, 1]} : vector<2x32x32xf32> to vector<1x32x32xf32>
    %4 = vector.shape_cast %3 : vector<1x32x32xf32> to vector<32x32xf32>
    %cst = arith.constant dense<0.000000e+00> : vector<16x32xf32>
    %5 = tpu.matmul %0, %4, %cst {dimension_numbers = #tpu.dot_dimension_numbers<[1], [0], [0], [1], [0, 0, 1, 1], [], []>} : vector<16x32xf32>, vector<32x32xf32>, vector<16x32xf32> -> vector<16x32xf32>
    %6 = vector.extract_strided_slice %2 {offsets = [0, 0, 0], sizes = [1, 1, 32], strides = [1, 1, 1]} : vector<2x1x32xf32> to vector<1x1x32xf32>
    %7 = vector.shape_cast %6 : vector<1x1x32xf32> to vector<1x32xf32>
    %8 = vector.broadcast %7 : vector<1x32xf32> to vector<16x32xf32>
    %9 = arith.addf %5, %8 : vector<16x32xf32>
    %10 = vector.extract_strided_slice %1 {offsets = [1, 0, 0], sizes = [1, 32, 32], strides = [1, 1, 1]} : vector<2x32x32xf32> to vector<1x32x32xf32>
    %11 = vector.shape_cast %10 : vector<1x32x32xf32> to vector<32x32xf32>
    %cst_7 = arith.constant dense<0.000000e+00> : vector<16x32xf32>
    %12 = tpu.matmul %0, %11, %cst_7 {dimension_numbers = #tpu.dot_dimension_numbers<[1], [0], [0], [1], [0, 0, 1, 1], [], []>} : vector<16x32xf32>, vector<32x32xf32>, vector<16x32xf32> -> vector<16x32xf32>
    %13 = vector.extract_strided_slice %2 {offsets = [1, 0, 0], sizes = [1, 1, 32], strides = [1, 1, 1]} : vector<2x1x32xf32> to vector<1x1x32xf32>
    %14 = vector.shape_cast %13 : vector<1x1x32xf32> to vector<1x32xf32>
    %15 = vector.broadcast %14 : vector<1x32xf32> to vector<16x32xf32>
    %16 = arith.addf %12, %15 : vector<16x32xf32>
    %17 = arith.addf %9, %16 : vector<16x32xf32>
    %c0_8 = arith.constant 0 : index
    %c0_9 = arith.constant 0 : index
    %18 = vector.load %arg4[%c0_8, %c0_9] : memref<16x32xf32, #tpu.memory_space<vmem>>, vector<16x32xf32>
    tpu.vector_store %arg4[%c0_8, %c0_9], %17 {strides = array<i32>} : memref<16x32xf32, #tpu.memory_space<vmem>>, vector<16x32xf32>,
    return
  }
  func.func @transform_0(%arg0: i32) -> (i32, i32) {
    %c0_i32 = arith.constant 0 : i32
    %c0_i32_0 = arith.constant 0 : i32
    return %arg0, %c0_i32 : i32, i32
  }
  func.func @transform_1(%arg0: i32) -> (i32, i32, i32) {
    %c0_i32 = arith.constant 0 : i32
    %c0_i32_0 = arith.constant 0 : i32
    %c0_i32_1 = arith.constant 0 : i32
    %c0_i32_2 = arith.constant 0 : i32
    return %c0_i32, %c0_i32_0, %c0_i32_1 : i32, i32, i32
  }
  func.func @transform_2(%arg0: i32) -> (i32, i32, i32) {
    %c0_i32 = arith.constant 0 : i32
    %c0_i32_0 = arith.constant 0 : i32
    %c0_i32_1 = arith.constant 0 : i32
    %c0_i32_2 = arith.constant 0 : i32
    return %c0_i32, %c0_i32_0, %c0_i32_1 : i32, i32, i32
  }
  func.func @transform_3(%arg0: i32) -> (i32, i32) {
    %c0_i32 = arith.constant 0 : i32
    %c0_i32_0 = arith.constant 0 : i32
    return %arg0, %c0_i32 : i32, i32
  }
}

</mosaic_0001>

<llo_original>
// kernel: tpu_custom_call.1
$region0: #{tpu_custom_call.1}
  #allocation0 [shape = 'u32[]', space=smem, size = 0x4, offset = 0x4, fixed_abs, tag = 'smem constant byte address 0x4 - core index']
  #allocation1 [shape = 'u32[144,128]{1,0:T(1,128)}', space=vmem, size = 0x12000, scoped, tag = 'internal scratch']
  %s0 = inlined_call_operand.hbm [shape: f32[16,32], index: 0, kind: input, shape index: {}]
  %s1 = inlined_call_operand.hbm [shape: f32[2,32,32], index: 1, kind: input, shape index: {}]
  %s2 = inlined_call_operand.vmem [shape: f32[2,1,32], index: 2, kind: input, shape index: {}]
  %s3 = inlined_call_operand.hbm [shape: f32[16,32], index: 3, kind: output, shape index: {}]
  %s4 = sld [smem:[#allocation0]]
  $region30: #{tpu_custom_call.1} parent=0
    _
  %s6 = ssub.s32 1, %s4
  %s7 = scalar_select 0, %s6, %s4
  $region1: #{tpu_custom_call.1} parent=0
    #allocation2 [shape = 'u8[8192]{0}', space=vmem, size = 0x2000, scoped, tag = 'input window, operand 0, single buffered']
    #allocation3 [shape = 's32[1]{0}', space=sflag, size = 0x4, scoped, tag = 'scoped memory for tpu_custom_call.1']
    #allocation4 [shape = 's32[1]{0}', space=sflag, size = 0x4, scoped, tag = 'scoped memory for tpu_custom_call.1']
    #allocation5 [shape = 'u8[32768]{0}', space=vmem, size = 0x8000, scoped, tag = 'input window, operand 1, single buffered']
    #allocation6 [shape = 's32[1]{0}', space=sflag, size = 0x4, scoped, tag = 'scoped memory for tpu_custom_call.1']
    #allocation7 [shape = 'u8[8192]{0}', space=vmem, size = 0x2000, scoped, tag = 'output window, operand 0, single buffered']
    %8 = vsyncpa [#allocation3], 0
    %9 = vsyncpa [#allocation6], 0
    %10 = vsyncpa [#allocation4], 0
    // Predicated region
    $region2: #{tpu_custom_call.1} parent=1 // pred_check
      _
    $region3: #{tpu_custom_call.1} parent=1 // pred_check_branch
      %12 = sbr.rel (0) target = $region5
    $region4: #{tpu_custom_call.1} parent=1 // pred_region
      %s14 = ssub.s32 256, 256
      %15 = vsyncadd [#allocation3], %s14
      %s16 = sshll.u32 [#allocation2], 4
      %s17 = int_to_ptr.vmem [resolvable:$true] %s16
      %22 = dma.hbm_to_vmem [thread:$0]  %s0, 256, %s17, [#allocation3], 128, 128, 8
    $region5: #{tpu_custom_call.1} parent=1 // pred_fallthru
      _
    // Predicated region
    $region6: #{tpu_custom_call.1} parent=1 // pred_check
      _
    $region7: #{tpu_custom_call.1} parent=1 // pred_check_branch
      %24 = sbr.rel (0) target = $region9
    $region8: #{tpu_custom_call.1} parent=1 // pred_region
      %s26 = ssub.s32 1024, 1024
      %27 = vsyncadd [#allocation6], %s26
      %s28 = sshll.u32 [#allocation5], 4
      %s29 = int_to_ptr.vmem [resolvable:$true] %s28
      %34 = dma.hbm_to_vmem [thread:$0]  %s1, 1024, %s29, [#allocation6], 128, 128, 8
    $region9: #{tpu_custom_call.1} parent=1 // pred_fallthru
      _
    // Predicated region
    $region10: #{tpu_custom_call.1} parent=1 // pred_check
      _
    $region11: #{tpu_custom_call.1} parent=1 // pred_check_branch
      %36 = sbr.rel (0) target = $region13
    $region12: #{tpu_custom_call.1} parent=1 // pred_region
      _
    $region13: #{tpu_custom_call.1} parent=1 // pred_fallthru
      _
    // Predicated region
    $region14: #{tpu_custom_call.1} parent=1 // pred_check
      _
    $region15: #{tpu_custom_call.1} parent=1 // pred_check_branch
      %38 = sbr.rel (0) target = $region17
    $region16: #{tpu_custom_call.1} parent=1 // pred_region
      %39 = dma.done [#allocation3], 256
    $region17: #{tpu_custom_call.1} parent=1 // pred_fallthru
      _
    // Predicated region
    $region18: #{tpu_custom_call.1} parent=1 // pred_check
      _
    $region19: #{tpu_custom_call.1} parent=1 // pred_check_branch
      %41 = sbr.rel (0) target = $region21
    $region20: #{tpu_custom_call.1} parent=1 // pred_region
      %42 = dma.done [#allocation6], 1024
    $region21: #{tpu_custom_call.1} parent=1 // pred_fallthru
      _
    %v43 = vld [vmem:[#allocation2] sm:$0xff]
    %v44 = vld [vmem:[#allocation2 + $0x8] sm:$0xff]
    %v45 = vld [vmem:[#allocation5] sm:$0xff]
    %v46 = vld [vmem:[#allocation5 + $0x8] sm:$0xff]
    %v47 = vld [vmem:[#allocation5 + $0x10] sm:$0xff]
    %v48 = vld [vmem:[#allocation5 + $0x18] sm:$0xff]
    %v49 = vld [vmem:[#allocation5 + $0x20] sm:$0xff]
    %v50 = vld [vmem:[#allocation5 + $0x28] sm:$0xff]
    %v51 = vld [vmem:[#allocation5 + $0x30] sm:$0xff]
    %v52 = vld [vmem:[#allocation5 + $0x38] sm:$0xff]
    %v53 = vld [vmem:[%s2] sm:$0x1]
    %v54 = vld [vmem:[%s2 + $0x1] sm:$0x1]
    %v56 = vlaneseq
    %v57 = vshrl.u32 %v56, 7
    %v58 = vsub.s32 0, %v57
    %v59 = vrot.slane %v53, %v58
    %vm61 = vcmask 261120
    %v63 = vsel %vm61, %v43, 0
    %v66 = vsel %vm61, %v44, 0
    %68 = vmatprep.subr.mxu0 0.0
    %69 = vmatpush1.msra.mxu0 %v45
    %70 = vmatprep.subr.mxu0 0.0
    %71 = vmatpush1.msra.mxu0 %v46
    %72 = vmatprep.subr.mxu0 0.0
    %73 = vmatpush1.msra.mxu0 %v47
    %74 = vmatprep.subr.mxu0 0.0
    %75 = vmatpush1.msra.mxu0 %v48
    %76 = vmatprep.subr.mxu0 0.0
    %77 = vmatpush1.msra.mxu0 0.0
    %78 = vmatprep.subr.mxu0 0.0
    %79 = vmatpush1.msra.mxu0 0.0
    %80 = vmatprep.subr.mxu0 0.0
    %81 = vmatpush1.msra.mxu0 0.0
    %82 = vmatprep.subr.mxu0 0.0
    %83 = vmatpush1.msra.mxu0 0.0
    %84 = vmatprep.subr.mxu0 0.0
    %85 = vmatpush1.msra.mxu0 0.0
    %86 = vmatprep.subr.mxu0 0.0
    %87 = vmatpush1.msra.mxu0 0.0
    %88 = vmatprep.subr.mxu0 0.0
    %89 = vmatpush1.msra.mxu0 0.0
    %90 = vmatprep.subr.mxu0 0.0
    %91 = vmatpush1.msra.mxu0 0.0
    %92 = vmatprep.subr.mxu0 0.0
    %93 = vmatpush1.msra.mxu0 0.0
    %94 = vmatprep.subr.mxu0 0.0
    %95 = vmatpush1.msra.mxu0 0.0
    %96 = vmatprep.subr.mxu0 0.0
    %97 = vmatpush1.msra.mxu0 0.0
    %98 = vmatprep.subr.mxu0 0.0
    %99 = vmatpush1.msra.mxu0 0.0
    %100 = vmatprep.subr.mxu0 0.0
    %101 = vmatpush1.msra.mxu0 0.0
    %102 = vmatprep.subr.mxu0 0.0
    %103 = vmatpush1.msra.mxu0 0.0
    %104 = vmatprep.subr.mxu0 0.0
    %105 = vmatpush1.msra.mxu0 0.0
    %106 = vmatprep.subr.mxu0 0.0
    %107 = vmatpush1.msra.mxu0 0.0
    %108 = vmatprep.subr.mxu0 0.0
    %109 = vmatpush1.msra.mxu0 0.0
    %110 = vmatprep.subr.mxu0 0.0
    %111 = vmatpush1.msra.mxu0 0.0
    %112 = vmatprep.subr.mxu0 0.0
    %113 = vmatpush1.msra.mxu0 0.0
    %114 = vmatprep.subr.mxu0 0.0
    %115 = vmatpush1.msra.mxu0 0.0
    %116 = vmatprep.subr.mxu0 0.0
    %117 = vmatpush1.msra.mxu0 0.0
    %118 = vmatprep.subr.mxu0 0.0
    %119 = vmatpush1.msra.mxu0 0.0
    %120 = vmatprep.subr.mxu0 0.0
    %121 = vmatpush1.msra.mxu0 0.0
    %122 = vmatprep.subr.mxu0 0.0
    %123 = vmatpush1.msra.mxu0 0.0
    %124 = vmatprep.subr.mxu0 0.0
    %125 = vmatpush1.msra.mxu0 0.0
    %126 = vmatprep.subr.mxu0 0.0
    %127 = vmatpush1.msra.mxu0 0.0
    %128 = vmatprep.subr.mxu0 0.0
    %129 = vmatpush1.msra.mxu0 0.0
    %130 = vmatprep.subr.mxu0 0.0
    %131 = vmatpush1.msra.mxu0 0.0
    %132 = vmatprep.mubr.f32.mxu0 0.0
    %133 = vmatmul.mubr.f32.gmra.mrb[0].mxu0 %v63
    %v134 = vpop.f32.mrb[0].mxu0
    %v135 = vadd.f32 %v59, %v134
    %v136 = vpop.f32.mrb[0].mxu0
    %137 = vmatprep.mubr.f32.mxu0 0.0
    %138 = vmatmul.mubr.f32.gmra.mrb[0].mxu0 %v66
    %v139 = vpop.f32.mrb[0].mxu0
    %v140 = vadd.f32 %v59, %v139
    %v141 = vpop.f32.mrb[0].mxu0
    %142 = vdwg.mxu0
    %v144 = vlaneseq
    %v145 = vshrl.u32 %v144, 7
    %v146 = vsub.s32 0, %v145
    %v147 = vrot.slane %v54, %v146
    %149 = vmatprep.subr.mxu0 0.0
    %150 = vmatpush1.msra.mxu0 %v49
    %151 = vmatprep.subr.mxu0 0.0
    %152 = vmatpush1.msra.mxu0 %v50
    %153 = vmatprep.subr.mxu0 0.0
    %154 = vmatpush1.msra.mxu0 %v51
    %155 = vmatprep.subr.mxu0 0.0
    %156 = vmatpush1.msra.mxu0 %v52
    %157 = vmatprep.subr.mxu0 0.0
    %158 = vmatpush1.msra.mxu0 0.0
    %159 = vmatprep.subr.mxu0 0.0
    %160 = vmatpush1.msra.mxu0 0.0
    %161 = vmatprep.subr.mxu0 0.0
    %162 = vmatpush1.msra.mxu0 0.0
    %163 = vmatprep.subr.mxu0 0.0
    %164 = vmatpush1.msra.mxu0 0.0
    %165 = vmatprep.subr.mxu0 0.0
    %166 = vmatpush1.msra.mxu0 0.0
    %167 = vmatprep.subr.mxu0 0.0
    %168 = vmatpush1.msra.mxu0 0.0
    %169 = vmatprep.subr.mxu0 0.0
    %170 = vmatpush1.msra.mxu0 0.0
    %171 = vmatprep.subr.mxu0 0.0
    %172 = vmatpush1.msra.mxu0 0.0
    %173 = vmatprep.subr.mxu0 0.0
    %174 = vmatpush1.msra.mxu0 0.0
    %175 = vmatprep.subr.mxu0 0.0
    %176 = vmatpush1.msra.mxu0 0.0
    %177 = vmatprep.subr.mxu0 0.0
    %178 = vmatpush1.msra.mxu0 0.0
    %179 = vmatprep.subr.mxu0 0.0
    %180 = vmatpush1.msra.mxu0 0.0
    %181 = vmatprep.subr.mxu0 0.0
    %182 = vmatpush1.msra.mxu0 0.0
    %183 = vmatprep.subr.mxu0 0.0
    %184 = vmatpush1.msra.mxu0 0.0
    %185 = vmatprep.subr.mxu0 0.0
    %186 = vmatpush1.msra.mxu0 0.0
    %187 = vmatprep.subr.mxu0 0.0
    %188 = vmatpush1.msra.mxu0 0.0
    %189 = vmatprep.subr.mxu0 0.0
    %190 = vmatpush1.msra.mxu0 0.0
    %191 = vmatprep.subr.mxu0 0.0
    %192 = vmatpush1.msra.mxu0 0.0
    %193 = vmatprep.subr.mxu0 0.0
    %194 = vmatpush1.msra.mxu0 0.0
    %195 = vmatprep.subr.mxu0 0.0
    %196 = vmatpush1.msra.mxu0 0.0
    %197 = vmatprep.subr.mxu0 0.0
    %198 = vmatpush1.msra.mxu0 0.0
    %199 = vmatprep.subr.mxu0 0.0
    %200 = vmatpush1.msra.mxu0 0.0
    %201 = vmatprep.subr.mxu0 0.0
    %202 = vmatpush1.msra.mxu0 0.0
    %203 = vmatprep.subr.mxu0 0.0
    %204 = vmatpush1.msra.mxu0 0.0
    %205 = vmatprep.subr.mxu0 0.0
    %206 = vmatpush1.msra.mxu0 0.0
    %207 = vmatprep.subr.mxu0 0.0
    %208 = vmatpush1.msra.mxu0 0.0
    %209 = vmatprep.subr.mxu0 0.0
    %210 = vmatpush1.msra.mxu0 0.0
    %211 = vmatprep.subr.mxu0 0.0
    %212 = vmatpush1.msra.mxu0 0.0
    %213 = vmatprep.mubr.f32.mxu0 0.0
    %214 = vmatmul.mubr.f32.gmra.mrb[0].mxu0 %v63
    %v215 = vpop.f32.mrb[0].mxu0
    %v216 = vadd.f32 %v147, %v215
    %v217 = vpop.f32.mrb[0].mxu0
    %218 = vmatprep.mubr.f32.mxu0 0.0
    %219 = vmatmul.mubr.f32.gmra.mrb[0].mxu0 %v66
    %v220 = vpop.f32.mrb[0].mxu0
    %v221 = vadd.f32 %v147, %v220
    %v222 = vpop.f32.mrb[0].mxu0
    %223 = vdwg.mxu0
    %v224 = vadd.f32 %v135, %v216
    %v225 = vadd.f32 %v140, %v221
    %226 = vst.msk [vmem:[#allocation7] sm:$0xff] %vm61, %v224
    %227 = vst.msk [vmem:[#allocation7 + $0x8] sm:$0xff] %vm61, %v225
    // Predicated region
    $region22: #{tpu_custom_call.1} parent=1 // pred_check
      _
    $region23: #{tpu_custom_call.1} parent=1 // pred_check_branch
      %229 = sbr.rel (0) target = $region25
    $region24: #{tpu_custom_call.1} parent=1 // pred_region
      %s231 = ssub.s32 256, 256
      %232 = vsyncadd [#allocation4], %s231
      %s233 = sshll.u32 [#allocation7], 4
      %s234 = int_to_ptr.vmem [resolvable:$true] %s233
      %239 = dma.vmem_to_hbm [thread:$0]  %s234, 256, %s3, [#allocation4], 128, 128, 8
    $region25: #{tpu_custom_call.1} parent=1 // pred_fallthru
      _
    // Predicated region
    $region26: #{tpu_custom_call.1} parent=1 // pred_check
      _
    $region27: #{tpu_custom_call.1} parent=1 // pred_check_branch
      %241 = sbr.rel (0) target = $region29
    $region28: #{tpu_custom_call.1} parent=1 // pred_region
      %242 = dma.done [#allocation4], 256
    $region29: #{tpu_custom_call.1} parent=1 // pred_fallthru
      _
    %243 = vsyncpa [#allocation3], 1
    %244 = vsyncpa [#allocation6], 1
    %245 = vsyncpa [#allocation4], 1

</llo_original>
